<compile_context>
chip_gen: v7x
topology: tpu7x:2x2x1
jax: 0.10.0
libtpu: 0.0.40
codegen_flags: <defaults>
</compile_context>

<pallas_src>
import functools

import jax
import jax.numpy as jnp
import numpy as np
from jax.experimental import pallas as pl
from jax.experimental.pallas import tpu as pltpu


def _ensemble_kernel(x_ref, w1p_ref, b1p_ref, w23_ref, b23_ref, r_ref,
                     out_ref, *, half):
    # Fused hidden layer for all M models: (B, D) @ (D, M*H) -> (B, M*H).
    h = jnp.maximum(
        jnp.dot(x_ref[...], w1p_ref[...],
                preferred_element_type=jnp.float32) + b1p_ref[...],
        0.0)

    # One full-width second-stage GEMM: columns [0, M*O) are the packed y0
    # (per-model head-0 outputs), columns [M*O, 2*M*O) are the pre-centered
    # d = y1 - mean_m(y1) (centering folded into the weights host-side).
    s = jnp.dot(h, w23_ref[...],
                preferred_element_type=jnp.float32) + b23_ref[...]

    # Square only the d-half (lane mask rides a free VALU slot).
    col = jax.lax.broadcasted_iota(jnp.int32, s.shape, dimension=1)
    t = jnp.where(col >= half, s * s, s)

    # Single reduction matmul: columns [0, O) of the output get mean_m y0
    # (scale 1/M), columns [O, 2*O) get sum_m d^2 / (M-1) (unbiased var).
    out_ref[...] = jnp.dot(t, r_ref[...], preferred_element_type=jnp.float32)


def pack_ensemble_params(w1, b1, w2, b2, w3, b3):
    """One-time host-side packing of ensemble weights into fused MXU slabs."""
    M, D, H = w1.shape
    O = w2.shape[-1]
    if M < 2:
        raise ValueError("Unbiased variance (ddof=1) needs M >= 2 models.")
    out_w = max(128, -(-(2 * O) // 128) * 128)   # lane-dense padded width

    f32 = jnp.float32
    w1 = w1.astype(f32); b1 = b1.astype(f32)
    w2 = w2.astype(f32); b2 = b2.astype(f32)
    w3 = w3.astype(f32); b3 = b3.astype(f32)

    # W1: (M, D, H) -> (D, M*H);  b1: (M, 1, H) -> (1, M*H)  (model-major lanes)
    w1p = jnp.transpose(w1, (1, 0, 2)).reshape(D, M * H)
    b1p = b1.reshape(1, M * H)

    # Block-diagonal second stage so the fused hidden picks each model's own
    # hidden slice: (M, H, O) -> (M*H, M*O).
    eye_m = jnp.eye(M, dtype=f32)
    w2bd = jnp.einsum("mn,mho->mhno", eye_m, w2).reshape(M * H, M * O)
    w3bd = jnp.einsum("mn,mho->mhno", eye_m, w3).reshape(M * H, M * O)
    b2c = b2.reshape(1, M * O)
    b3c = b3.reshape(1, M * O)

    # Fold the cross-model mean-subtraction into the third-layer weights:
    # d = y1 - mean_m(y1) = h @ (w3bd @ (I - avg)) + b3c @ (I - avg).
    eye_o = np.eye(O, dtype=np.float32)
    avg = jnp.asarray(np.tile(eye_o, (M, M)) / M)          # (M*O, M*O)
    cen = jnp.eye(M * O, dtype=f32) - avg
    w3d = w3bd @ cen
    b3d = b3c @ cen

    # Merge both heads into a single (M*H, 2*M*O) weight slab + (1, 2*M*O) bias.
    w23 = jnp.concatenate([w2bd, w3d], axis=1)
    b23 = jnp.concatenate([b2c, b3d], axis=1)

    # Single reduction matrix R: (2*M*O, out_w).
    #   y0 columns  (m*O + o)        -> out col o       with weight 1/M
    #   d^2 columns (M*O + m*O + o)  -> out col O + o   with weight 1/(M-1)
    r = np.zeros((2 * M * O, out_w), dtype=np.float32)
    for m in range(M):
        r[m * O:(m + 1) * O, 0:O] = eye_o / M
        r[M * O + m * O:M * O + (m + 1) * O, O:2 * O] = eye_o / (M - 1)
    R = jnp.asarray(r)

    return dict(w1p=w1p, b1p=b1p, w23=w23, b23=b23, R=R, out_dim=O)


@functools.partial(jax.jit, static_argnames=("out_dim",))
def _ensemble_call(x, w1p, b1p, w23, b23, R, *, out_dim):
    B = x.shape[0]
    half = w23.shape[1] // 2          # = M*O, static under jit
    out_w = R.shape[1]

    # Everything (weights + activations) is a few hundred KB -> fully VMEM
    # resident; single kernel invocation, no grid, no scratch.
    # TODO(synk): add a batch grid (parallel) for large B on v7x dual-TC.
    vmem = pl.BlockSpec(memory_space=pltpu.MemorySpace.VMEM)
    out = pl.pallas_call(
        functools.partial(_ensemble_kernel, half=half),
        out_shape=jax.ShapeDtypeStruct((B, out_w), jnp.float32),
        in_specs=[vmem] * 6,
        out_specs=vmem,
    )(x, w1p, b1p, w23, b23, R)
    return out[:, :out_dim], out[:, out_dim:2 * out_dim]


def ensemble_forward(x, packed):
    return _ensemble_call(x, packed["w1p"], packed["b1p"], packed["w23"],
                          packed["b23"], packed["R"], out_dim=packed["out_dim"])


def ensemble_reference(x, w1, b1, w2, b2, w3, b3):
    """Pure-JAX reference mirroring the PyTorch EnsembleModel semantics."""
    h = jnp.maximum(jnp.einsum("bd,mdh->mbh", x, w1) + b1, 0.0)
    out0 = jnp.einsum("mbh,mho->mbo", h, w2) + b2
    out1 = jnp.einsum("mbh,mho->mbo", h, w3) + b3
    mean_output = out0.mean(axis=0)
    variance = out1.var(axis=0, ddof=1)   # torch.var default is unbiased
    return mean_output, variance


if __name__ == "__main__":
    # Small shapes: ensemble of M=4 MLPs, batch=8, in=32, hidden=32, out=16.
    M, B, D, H, O = 4, 8, 32, 32, 16

    key = jax.random.PRNGKey(0)
    k = jax.random.split(key, 7)
    x = jax.random.normal(k[0], (B, D), dtype=jnp.float32)
    w1 = jax.random.normal(k[1], (M, D, H), dtype=jnp.float32) * 0.1
    b1 = jax.random.normal(k[2], (M, 1, H), dtype=jnp.float32) * 0.1
    w2 = jax.random.normal(k[3], (M, H, O), dtype=jnp.float32) * 0.1
    b2 = jax.random.normal(k[4], (M, 1, O), dtype=jnp.float32) * 0.1
    w3 = jax.random.normal(k[5], (M, H, O), dtype=jnp.float32) * 0.1
    b3 = jax.random.normal(k[6], (M, 1, O), dtype=jnp.float32) * 0.1

    # One-time packing (hoisted out of the per-call path).
    packed = pack_ensemble_params(w1, b1, w2, b2, w3, b3)
    jax.block_until_ready(packed)

    mean_out, var_out = ensemble_forward(x, packed)
    jax.block_until_ready((mean_out, var_out))

    mean_ref, var_ref = ensemble_reference(x, w1, b1, w2, b2, w3, b3)
    np.testing.assert_allclose(np.asarray(mean_out), np.asarray(mean_ref),
                               rtol=1e-4, atol=1e-4)
    np.testing.assert_allclose(np.asarray(var_out), np.asarray(var_ref),
                               rtol=1e-3, atol=1e-4)

    print("KERNEL_OK")
</pallas_src>

<mosaic_0001>
module attributes {stable_mosaic.version = 11 : i64} {
  func.func @_ensemble_kernel(%arg0: memref<8x32xf32, #tpu.memory_space<vmem>>, %arg1: memref<32x128xf32, #tpu.memory_space<vmem>>, %arg2: memref<1x128xf32, #tpu.memory_space<vmem>>, %arg3: memref<128x128xf32, #tpu.memory_space<vmem>>, %arg4: memref<1x128xf32, #tpu.memory_space<vmem>>, %arg5: memref<128x128xf32, #tpu.memory_space<vmem>>, %arg6: memref<8x128xf32, #tpu.memory_space<vmem>>) attributes {dimension_semantics = [], scalar_prefetch = 0 : i64, scratch_operands = 0 : i64, tpu.core_type = #tpu.core_type<tc>} {
    %c0 = arith.constant 0 : index
    %c0_0 = arith.constant 0 : index
    %0 = vector.load %arg0[%c0, %c0_0] : memref<8x32xf32, #tpu.memory_space<vmem>>, vector<8x32xf32>
    %c0_1 = arith.constant 0 : index
    %c0_2 = arith.constant 0 : index
    %1 = vector.load %arg1[%c0_1, %c0_2] : memref<32x128xf32, #tpu.memory_space<vmem>>, vector<32x128xf32>
    %cst = arith.constant dense<0.000000e+00> : vector<8x128xf32>
    %2 = tpu.matmul %0, %1, %cst {dimension_numbers = #tpu.dot_dimension_numbers<[1], [0], [0], [1], [0, 0, 1, 1], [], []>} : vector<8x32xf32>, vector<32x128xf32>, vector<8x128xf32> -> vector<8x128xf32>
    %c0_3 = arith.constant 0 : index
    %c0_4 = arith.constant 0 : index
    %3 = vector.load %arg2[%c0_3, %c0_4] : memref<1x128xf32, #tpu.memory_space<vmem>>, vector<1x128xf32>
    %4 = vector.broadcast %3 : vector<1x128xf32> to vector<8x128xf32>
    %5 = arith.addf %2, %4 : vector<8x128xf32>
    %cst_5 = arith.constant 0.000000e+00 : f32
    %6 = vector.broadcast %cst_5 : f32 to vector<8x128xf32>
    %7 = arith.maximumf %5, %6 : vector<8x128xf32>
    %c0_6 = arith.constant 0 : index
    %c0_7 = arith.constant 0 : index
    %8 = vector.load %arg3[%c0_6, %c0_7] : memref<128x128xf32, #tpu.memory_space<vmem>>, vector<128x128xf32>
    %cst_8 = arith.constant dense<0.000000e+00> : vector<8x128xf32>
    %9 = tpu.matmul %7, %8, %cst_8 {dimension_numbers = #tpu.dot_dimension_numbers<[1], [0], [0], [1], [0, 0, 1, 1], [], []>} : vector<8x128xf32>, vector<128x128xf32>, vector<8x128xf32> -> vector<8x128xf32>
    %c0_9 = arith.constant 0 : index
    %c0_10 = arith.constant 0 : index
    %10 = vector.load %arg4[%c0_9, %c0_10] : memref<1x128xf32, #tpu.memory_space<vmem>>, vector<1x128xf32>
    %11 = vector.broadcast %10 : vector<1x128xf32> to vector<8x128xf32>
    %12 = arith.addf %9, %11 : vector<8x128xf32>
    %13 = tpu.iota {dimensions = array<i32: 1>} : vector<8x128xi32>
    %c64_i32 = arith.constant 64 : i32
    %14 = vector.broadcast %c64_i32 : i32 to vector<8x128xi32>
    %15 = arith.cmpi sge, %13, %14 : vector<8x128xi32>
    %16 = arith.mulf %12, %12 : vector<8x128xf32>
    %17 = arith.select %15, %16, %12 : vector<8x128xi1>, vector<8x128xf32>
    %c0_11 = arith.constant 0 : index
    %c0_12 = arith.constant 0 : index
    %18 = vector.load %arg5[%c0_11, %c0_12] : memref<128x128xf32, #tpu.memory_space<vmem>>, vector<128x128xf32>
    %cst_13 = arith.constant dense<0.000000e+00> : vector<8x128xf32>
    %19 = tpu.matmul %17, %18, %cst_13 {dimension_numbers = #tpu.dot_dimension_numbers<[1], [0], [0], [1], [0, 0, 1, 1], [], []>} : vector<8x128xf32>, vector<128x128xf32>, vector<8x128xf32> -> vector<8x128xf32>
    %c0_14 = arith.constant 0 : index
    %c0_15 = arith.constant 0 : index
    %20 = vector.load %arg6[%c0_14, %c0_15] : memref<8x128xf32, #tpu.memory_space<vmem>>, vector<8x128xf32>
    tpu.vector_store %arg6[%c0_14, %c0_15], %19 {strides = array<i32>} : memref<8x128xf32, #tpu.memory_space<vmem>>, vector<8x128xf32>,
    return
  }
}

</mosaic_0001>

<llo_original>
// kernel: _ensemble_call.1
$region0: #{_ensemble_call.1}
  #allocation0 [shape = 'u32[]', space=smem, size = 0x4, offset = 0x4, fixed_abs, tag = 'smem constant byte address 0x4 - core index']
  #allocation1 [shape = 'u32[144,128]{1,0:T(1,128)}', space=vmem, size = 0x12000, scoped, tag = 'internal scratch']
  %s0 = inlined_call_operand.hbm [shape: f32[8,32], index: 0, kind: input, shape index: {}]
  %s1 = inlined_call_operand.hbm [shape: f32[32,128], index: 1, kind: input, shape index: {}]
  %s2 = inlined_call_operand.vmem [shape: f32[1,128], index: 2, kind: input, shape index: {}]
  %s3 = inlined_call_operand.hbm [shape: f32[128,128], index: 3, kind: input, shape index: {}]
  %s4 = inlined_call_operand.vmem [shape: f32[1,128], index: 4, kind: input, shape index: {}]
  %s5 = inlined_call_operand.hbm [shape: f32[128,128], index: 5, kind: input, shape index: {}]
  %s6 = inlined_call_operand.vmem [shape: f32[8,128], index: 6, kind: output, shape index: {}]
  %s7 = sld [smem:[#allocation0]]
  $region50: #{_ensemble_call.1} parent=0
    _
  %s9 = ssub.s32 1, %s7
  %s10 = scalar_select 0, %s9, %s7
  $region1: #{_ensemble_call.1} parent=0
    #allocation2 [shape = 'u8[4096]{0}', space=vmem, size = 0x1000, scoped, tag = 'input window, operand 0, single buffered']
    #allocation3 [shape = 's32[1]{0}', space=sflag, size = 0x4, scoped, tag = 'scoped memory for _ensemble_call.1']
    #allocation4 [shape = 'u8[16384]{0}', space=vmem, size = 0x4000, scoped, tag = 'input window, operand 1, single buffered']
    #allocation5 [shape = 's32[1]{0}', space=sflag, size = 0x4, scoped, tag = 'scoped memory for _ensemble_call.1']
    #allocation6 [shape = 'u8[65536]{0}', space=vmem, size = 0x10000, scoped, tag = 'input window, operand 3, single buffered']
    #allocation7 [shape = 'u8[65536]{0}', space=vmem, size = 0x10000, scoped, tag = 'input window, operand 5, single buffered']
    #allocation8 [shape = 's32[1]{0}', space=sflag, size = 0x4, scoped, tag = 'scoped memory for _ensemble_call.1']
    %11 = vsyncpa [#allocation3], 0
    %12 = vsyncpa [#allocation5], 0
    %13 = vsyncpa [#allocation8], 0
    // Predicated region
    $region2: #{_ensemble_call.1} parent=1 // pred_check
      _
    $region3: #{_ensemble_call.1} parent=1 // pred_check_branch
      %15 = sbr.rel (0) target = $region5
    $region4: #{_ensemble_call.1} parent=1 // pred_region
      %s17 = ssub.s32 128, 128
      %18 = vsyncadd [#allocation3], %s17
      %s20 = sshll.u32 [#allocation2], 4
      %s21 = int_to_ptr.vmem [resolvable:$true] %s20
      %23 = dma.hbm_to_vmem [thread:$0]  %s0, 128, %s21, [#allocation3]
    $region5: #{_ensemble_call.1} parent=1 // pred_fallthru
      _
    // Predicated region
    $region6: #{_ensemble_call.1} parent=1 // pred_check
      _
    $region7: #{_ensemble_call.1} parent=1 // pred_check_branch
      %25 = sbr.rel (0) target = $region9
    $region8: #{_ensemble_call.1} parent=1 // pred_region
      %s27 = ssub.s32 512, 512
      %28 = vsyncadd [#allocation5], %s27
      %s29 = sshll.u32 [#allocation4], 4
      %s30 = int_to_ptr.vmem [resolvable:$true] %s29
      %35 = dma.hbm_to_vmem [thread:$0]  %s1, 512, %s30, [#allocation5], 128, 128, 8
    $region9: #{_ensemble_call.1} parent=1 // pred_fallthru
      _
    // Predicated region
    $region10: #{_ensemble_call.1} parent=1 // pred_check
      _
    $region11: #{_ensemble_call.1} parent=1 // pred_check_branch
      %37 = sbr.rel (0) target = $region13
    $region12: #{_ensemble_call.1} parent=1 // pred_region
      _
    $region13: #{_ensemble_call.1} parent=1 // pred_fallthru
      _
    // Predicated region
    $region14: #{_ensemble_call.1} parent=1 // pred_check
      _
    $region15: #{_ensemble_call.1} parent=1 // pred_check_branch
      %39 = sbr.rel (0) target = $region17
    $region16: #{_ensemble_call.1} parent=1 // pred_region
      %s41 = ssub.s32 2048, 2048
      %42 = vsyncadd [#allocation5], %s41
      %s43 = sshll.u32 [#allocation6], 4
      %s44 = int_to_ptr.vmem [resolvable:$true] %s43
      %49 = dma.hbm_to_vmem [thread:$0]  %s3, 2048, %s44, [#allocation5], 128, 128, 8
    $region17: #{_ensemble_call.1} parent=1 // pred_fallthru
      _
    // Predicated region
    $region18: #{_ensemble_call.1} parent=1 // pred_check
      _
    $region19: #{_ensemble_call.1} parent=1 // pred_check_branch
      %51 = sbr.rel (0) target = $region21
    $region20: #{_ensemble_call.1} parent=1 // pred_region
      _
    $region21: #{_ensemble_call.1} parent=1 // pred_fallthru
      _
    // Predicated region
    $region22: #{_ensemble_call.1} parent=1 // pred_check
      _
    $region23: #{_ensemble_call.1} parent=1 // pred_check_branch
      %53 = sbr.rel (0) target = $region25
    $region24: #{_ensemble_call.1} parent=1 // pred_region
      %s55 = ssub.s32 2048, 2048
      %56 = vsyncadd [#allocation8], %s55
      %s57 = sshll.u32 [#allocation7], 4
      %s58 = int_to_ptr.vmem [resolvable:$true] %s57
      %63 = dma.hbm_to_vmem [thread:$0]  %s5, 2048, %s58, [#allocation8], 128, 128, 8
    $region25: #{_ensemble_call.1} parent=1 // pred_fallthru
      _
    // Predicated region
    $region26: #{_ensemble_call.1} parent=1 // pred_check
      _
    $region27: #{_ensemble_call.1} parent=1 // pred_check_branch
      %65 = sbr.rel (0) target = $region29
    $region28: #{_ensemble_call.1} parent=1 // pred_region
      %66 = dma.done [#allocation3], 128
    $region29: #{_ensemble_call.1} parent=1 // pred_fallthru
      _
    // Predicated region
    $region30: #{_ensemble_call.1} parent=1 // pred_check
      _
    $region31: #{_ensemble_call.1} parent=1 // pred_check_branch
      %68 = sbr.rel (0) target = $region33
    $region32: #{_ensemble_call.1} parent=1 // pred_region
      %69 = dma.done [#allocation5], 512
    $region33: #{_ensemble_call.1} parent=1 // pred_fallthru
      _
    // Predicated region
    $region34: #{_ensemble_call.1} parent=1 // pred_check
      _
    $region35: #{_ensemble_call.1} parent=1 // pred_check_branch
      %71 = sbr.rel (0) target = $region37
    $region36: #{_ensemble_call.1} parent=1 // pred_region
      %72 = dma.done [#allocation5], 2048
    $region37: #{_ensemble_call.1} parent=1 // pred_fallthru
      _
    // Predicated region
    $region38: #{_ensemble_call.1} parent=1 // pred_check
      _
    $region39: #{_ensemble_call.1} parent=1 // pred_check_branch
      %74 = sbr.rel (0) target = $region41
    $region40: #{_ensemble_call.1} parent=1 // pred_region
      %75 = dma.done [#allocation8], 2048
    $region41: #{_ensemble_call.1} parent=1 // pred_fallthru
      _
    %v76 = vld [vmem:[#allocation2] sm:$0xff]
    %v77 = vld [vmem:[#allocation4] sm:$0xff]
    %v78 = vld [vmem:[#allocation4 + $0x8] sm:$0xff]
    %v79 = vld [vmem:[#allocation4 + $0x10] sm:$0xff]
    %v80 = vld [vmem:[#allocation4 + $0x18] sm:$0xff]
    %v81 = vld [vmem:[%s2] sm:$0x1]
    %v83 = vlaneseq
    %v84 = vshrl.u32 %v83, 7
    %v85 = vsub.s32 0, %v84
    %v86 = vrot.slane %v81, %v85
    %vm88 = vcmask 261120
    %v90 = vsel %vm88, %v76, 0
    %92 = vmatprep.subr.mxu0 0.0
    %93 = vmatpush1.msra.mxu0 %v77
    %94 = vmatprep.subr.mxu0 0.0
    %95 = vmatpush1.msra.mxu0 %v78
    %96 = vmatprep.subr.mxu0 0.0
    %97 = vmatpush1.msra.mxu0 %v79
    %98 = vmatprep.subr.mxu0 0.0
    %99 = vmatpush1.msra.mxu0 %v80
    %100 = vmatprep.subr.mxu0 0.0
    %101 = vmatpush1.msra.mxu0 0.0
    %102 = vmatprep.subr.mxu0 0.0
    %103 = vmatpush1.msra.mxu0 0.0
    %104 = vmatprep.subr.mxu0 0.0
    %105 = vmatpush1.msra.mxu0 0.0
    %106 = vmatprep.subr.mxu0 0.0
    %107 = vmatpush1.msra.mxu0 0.0
    %108 = vmatprep.subr.mxu0 0.0
    %109 = vmatpush1.msra.mxu0 0.0
    %110 = vmatprep.subr.mxu0 0.0
    %111 = vmatpush1.msra.mxu0 0.0
    %112 = vmatprep.subr.mxu0 0.0
    %113 = vmatpush1.msra.mxu0 0.0
    %114 = vmatprep.subr.mxu0 0.0
    %115 = vmatpush1.msra.mxu0 0.0
    %116 = vmatprep.subr.mxu0 0.0
    %117 = vmatpush1.msra.mxu0 0.0
    %118 = vmatprep.subr.mxu0 0.0
    %119 = vmatpush1.msra.mxu0 0.0
    %120 = vmatprep.subr.mxu0 0.0
    %121 = vmatpush1.msra.mxu0 0.0
    %122 = vmatprep.subr.mxu0 0.0
    %123 = vmatpush1.msra.mxu0 0.0
    %124 = vmatprep.subr.mxu0 0.0
    %125 = vmatpush1.msra.mxu0 0.0
    %126 = vmatprep.subr.mxu0 0.0
    %127 = vmatpush1.msra.mxu0 0.0
    %128 = vmatprep.subr.mxu0 0.0
    %129 = vmatpush1.msra.mxu0 0.0
    %130 = vmatprep.subr.mxu0 0.0
    %131 = vmatpush1.msra.mxu0 0.0
    %132 = vmatprep.subr.mxu0 0.0
    %133 = vmatpush1.msra.mxu0 0.0
    %134 = vmatprep.subr.mxu0 0.0
    %135 = vmatpush1.msra.mxu0 0.0
    %136 = vmatprep.subr.mxu0 0.0
    %137 = vmatpush1.msra.mxu0 0.0
    %138 = vmatprep.subr.mxu0 0.0
    %139 = vmatpush1.msra.mxu0 0.0
    %140 = vmatprep.subr.mxu0 0.0
    %141 = vmatpush1.msra.mxu0 0.0
    %142 = vmatprep.subr.mxu0 0.0
    %143 = vmatpush1.msra.mxu0 0.0
    %144 = vmatprep.subr.mxu0 0.0
    %145 = vmatpush1.msra.mxu0 0.0
    %146 = vmatprep.subr.mxu0 0.0
    %147 = vmatpush1.msra.mxu0 0.0
    %148 = vmatprep.subr.mxu0 0.0
    %149 = vmatpush1.msra.mxu0 0.0
    %150 = vmatprep.subr.mxu0 0.0
    %151 = vmatpush1.msra.mxu0 0.0
    %152 = vmatprep.subr.mxu0 0.0
    %153 = vmatpush1.msra.mxu0 0.0
    %154 = vmatprep.subr.mxu0 0.0
    %155 = vmatpush1.msra.mxu0 0.0
    %156 = vmatprep.mubr.f32.mxu0 0.0
    %157 = vmatmul.mubr.f32.gmra.mrb[0].mxu0 %v90
    %v158 = vpop.f32.mrb[0].mxu0
    %v159 = vadd.f32 %v86, %v158
    %v160 = vpop.f32.mrb[0].mxu0
    %161 = vdwg.mxu0
    %v162 = vmax.f32 %v159, 0.0
    %v163 = vld [vmem:[#allocation6] sm:$0xff]
    %v164 = vld [vmem:[#allocation6 + $0x8] sm:$0xff]
    %v165 = vld [vmem:[#allocation6 + $0x10] sm:$0xff]
    %v166 = vld [vmem:[#allocation6 + $0x18] sm:$0xff]
    %v167 = vld [vmem:[#allocation6 + $0x20] sm:$0xff]
    %v168 = vld [vmem:[#allocation6 + $0x28] sm:$0xff]
    %v169 = vld [vmem:[#allocation6 + $0x30] sm:$0xff]
    %v170 = vld [vmem:[#allocation6 + $0x38] sm:$0xff]
    %v171 = vld [vmem:[#allocation6 + $0x40] sm:$0xff]
    %v172 = vld [vmem:[#allocation6 + $0x48] sm:$0xff]
    %v173 = vld [vmem:[#allocation6 + $0x50] sm:$0xff]
    %v174 = vld [vmem:[#allocation6 + $0x58] sm:$0xff]
    %v175 = vld [vmem:[#allocation6 + $0x60] sm:$0xff]
    %v176 = vld [vmem:[#allocation6 + $0x68] sm:$0xff]
    %v177 = vld [vmem:[#allocation6 + $0x70] sm:$0xff]
    %v178 = vld [vmem:[#allocation6 + $0x78] sm:$0xff]
    %v179 = vld [vmem:[%s4] sm:$0x1]
    %v181 = vlaneseq
    %v182 = vshrl.u32 %v181, 7
    %v183 = vsub.s32 0, %v182
    %v184 = vrot.slane %v179, %v183
    %186 = vmatprep.subr.mxu0 0.0
    %187 = vmatpush1.msra.mxu0 %v163
    %188 = vmatprep.subr.mxu0 0.0
    %189 = vmatpush1.msra.mxu0 %v164
    %190 = vmatprep.subr.mxu0 0.0
    %191 = vmatpush1.msra.mxu0 %v165
    %192 = vmatprep.subr.mxu0 0.0
    %193 = vmatpush1.msra.mxu0 %v166
    %194 = vmatprep.subr.mxu0 0.0
    %195 = vmatpush1.msra.mxu0 %v167
    %196 = vmatprep.subr.mxu0 0.0
    %197 = vmatpush1.msra.mxu0 %v168
    %198 = vmatprep.subr.mxu0 0.0
    %199 = vmatpush1.msra.mxu0 %v169
    %200 = vmatprep.subr.mxu0 0.0
    %201 = vmatpush1.msra.mxu0 %v170
    %202 = vmatprep.subr.mxu0 0.0
    %203 = vmatpush1.msra.mxu0 %v171
    %204 = vmatprep.subr.mxu0 0.0
    %205 = vmatpush1.msra.mxu0 %v172
    %206 = vmatprep.subr.mxu0 0.0
    %207 = vmatpush1.msra.mxu0 %v173
    %208 = vmatprep.subr.mxu0 0.0
    %209 = vmatpush1.msra.mxu0 %v174
    %210 = vmatprep.subr.mxu0 0.0
    %211 = vmatpush1.msra.mxu0 %v175
    %212 = vmatprep.subr.mxu0 0.0
    %213 = vmatpush1.msra.mxu0 %v176
    %214 = vmatprep.subr.mxu0 0.0
    %215 = vmatpush1.msra.mxu0 %v177
    %216 = vmatprep.subr.mxu0 0.0
    %217 = vmatpush1.msra.mxu0 %v178
    %218 = vmatprep.subr.mxu0 0.0
    %219 = vmatpush1.msra.mxu0 0.0
    %220 = vmatprep.subr.mxu0 0.0
    %221 = vmatpush1.msra.mxu0 0.0
    %222 = vmatprep.subr.mxu0 0.0
    %223 = vmatpush1.msra.mxu0 0.0
    %224 = vmatprep.subr.mxu0 0.0
    %225 = vmatpush1.msra.mxu0 0.0
    %226 = vmatprep.subr.mxu0 0.0
    %227 = vmatpush1.msra.mxu0 0.0
    %228 = vmatprep.subr.mxu0 0.0
    %229 = vmatpush1.msra.mxu0 0.0
    %230 = vmatprep.subr.mxu0 0.0
    %231 = vmatpush1.msra.mxu0 0.0
    %232 = vmatprep.subr.mxu0 0.0
    %233 = vmatpush1.msra.mxu0 0.0
    %234 = vmatprep.subr.mxu0 0.0
    %235 = vmatpush1.msra.mxu0 0.0
    %236 = vmatprep.subr.mxu0 0.0
    %237 = vmatpush1.msra.mxu0 0.0
    %238 = vmatprep.subr.mxu0 0.0
    %239 = vmatpush1.msra.mxu0 0.0
    %240 = vmatprep.subr.mxu0 0.0
    %241 = vmatpush1.msra.mxu0 0.0
    %242 = vmatprep.subr.mxu0 0.0
    %243 = vmatpush1.msra.mxu0 0.0
    %244 = vmatprep.subr.mxu0 0.0
    %245 = vmatpush1.msra.mxu0 0.0
    %246 = vmatprep.subr.mxu0 0.0
    %247 = vmatpush1.msra.mxu0 0.0
    %248 = vmatprep.subr.mxu0 0.0
    %249 = vmatpush1.msra.mxu0 0.0
    %250 = vmatprep.mubr.f32.mxu0 0.0
    %251 = vmatmul.mubr.f32.gmra.mrb[0].mxu0 %v162
    %v252 = vpop.f32.mrb[0].mxu0
    %v253 = vadd.f32 %v184, %v252
    %v254 = vpop.f32.mrb[0].mxu0
    %255 = vdwg.mxu0
    %v256 = vlaneseq
    %v257 = vand.u32 %v256, 127
    %vm258 = vcmp.ge.s32.totalorder %v257, 64
    %v259 = vmul.f32 %v253, %v253
    %v260 = vsel %vm258, %v259, %v253
    %v261 = vld [vmem:[#allocation7] sm:$0xff]
    %v262 = vld [vmem:[#allocation7 + $0x8] sm:$0xff]
    %v263 = vld [vmem:[#allocation7 + $0x10] sm:$0xff]
    %v264 = vld [vmem:[#allocation7 + $0x18] sm:$0xff]
    %v265 = vld [vmem:[#allocation7 + $0x20] sm:$0xff]
    %v266 = vld [vmem:[#allocation7 + $0x28] sm:$0xff]
    %v267 = vld [vmem:[#allocation7 + $0x30] sm:$0xff]
    %v268 = vld [vmem:[#allocation7 + $0x38] sm:$0xff]
    %v269 = vld [vmem:[#allocation7 + $0x40] sm:$0xff]
    %v270 = vld [vmem:[#allocation7 + $0x48] sm:$0xff]
    %v271 = vld [vmem:[#allocation7 + $0x50] sm:$0xff]
    %v272 = vld [vmem:[#allocation7 + $0x58] sm:$0xff]
    %v273 = vld [vmem:[#allocation7 + $0x60] sm:$0xff]
    %v274 = vld [vmem:[#allocation7 + $0x68] sm:$0xff]
    %v275 = vld [vmem:[#allocation7 + $0x70] sm:$0xff]
    %v276 = vld [vmem:[#allocation7 + $0x78] sm:$0xff]
    %277 = vmatprep.subr.mxu0 0.0
    %278 = vmatpush1.msra.mxu0 %v261
    %279 = vmatprep.subr.mxu0 0.0
    %280 = vmatpush1.msra.mxu0 %v262
    %281 = vmatprep.subr.mxu0 0.0
    %282 = vmatpush1.msra.mxu0 %v263
    %283 = vmatprep.subr.mxu0 0.0
    %284 = vmatpush1.msra.mxu0 %v264
    %285 = vmatprep.subr.mxu0 0.0
    %286 = vmatpush1.msra.mxu0 %v265
    %287 = vmatprep.subr.mxu0 0.0
    %288 = vmatpush1.msra.mxu0 %v266
    %289 = vmatprep.subr.mxu0 0.0
    %290 = vmatpush1.msra.mxu0 %v267
    %291 = vmatprep.subr.mxu0 0.0
    %292 = vmatpush1.msra.mxu0 %v268
    %293 = vmatprep.subr.mxu0 0.0
    %294 = vmatpush1.msra.mxu0 %v269
    %295 = vmatprep.subr.mxu0 0.0
    %296 = vmatpush1.msra.mxu0 %v270
    %297 = vmatprep.subr.mxu0 0.0
    %298 = vmatpush1.msra.mxu0 %v271
    %299 = vmatprep.subr.mxu0 0.0
    %300 = vmatpush1.msra.mxu0 %v272
    %301 = vmatprep.subr.mxu0 0.0
    %302 = vmatpush1.msra.mxu0 %v273
    %303 = vmatprep.subr.mxu0 0.0
    %304 = vmatpush1.msra.mxu0 %v274
    %305 = vmatprep.subr.mxu0 0.0
    %306 = vmatpush1.msra.mxu0 %v275
    %307 = vmatprep.subr.mxu0 0.0
    %308 = vmatpush1.msra.mxu0 %v276
    %309 = vmatprep.subr.mxu0 0.0
    %310 = vmatpush1.msra.mxu0 0.0
    %311 = vmatprep.subr.mxu0 0.0
    %312 = vmatpush1.msra.mxu0 0.0
    %313 = vmatprep.subr.mxu0 0.0
    %314 = vmatpush1.msra.mxu0 0.0
    %315 = vmatprep.subr.mxu0 0.0
    %316 = vmatpush1.msra.mxu0 0.0
    %317 = vmatprep.subr.mxu0 0.0
    %318 = vmatpush1.msra.mxu0 0.0
    %319 = vmatprep.subr.mxu0 0.0
    %320 = vmatpush1.msra.mxu0 0.0
    %321 = vmatprep.subr.mxu0 0.0
    %322 = vmatpush1.msra.mxu0 0.0
    %323 = vmatprep.subr.mxu0 0.0
    %324 = vmatpush1.msra.mxu0 0.0
    %325 = vmatprep.subr.mxu0 0.0
    %326 = vmatpush1.msra.mxu0 0.0
    %327 = vmatprep.subr.mxu0 0.0
    %328 = vmatpush1.msra.mxu0 0.0
    %329 = vmatprep.subr.mxu0 0.0
    %330 = vmatpush1.msra.mxu0 0.0
    %331 = vmatprep.subr.mxu0 0.0
    %332 = vmatpush1.msra.mxu0 0.0
    %333 = vmatprep.subr.mxu0 0.0
    %334 = vmatpush1.msra.mxu0 0.0
    %335 = vmatprep.subr.mxu0 0.0
    %336 = vmatpush1.msra.mxu0 0.0
    %337 = vmatprep.subr.mxu0 0.0
    %338 = vmatpush1.msra.mxu0 0.0
    %339 = vmatprep.subr.mxu0 0.0
    %340 = vmatpush1.msra.mxu0 0.0
    %341 = vmatprep.mubr.f32.mxu0 0.0
    %342 = vmatmul.mubr.f32.gmra.mrb[0].mxu0 %v260
    %v343 = vpop.f32.mrb[0].mxu0
    %v344 = vadd.f32 0.0, %v343
    %v345 = vpop.f32.mrb[0].mxu0
    %346 = vdwg.mxu0
    %347 = vst [vmem:[%s6] sm:$0xff] %v344
    // Predicated region
    $region42: #{_ensemble_call.1} parent=1 // pred_check
      _
    $region43: #{_ensemble_call.1} parent=1 // pred_check_branch
      %349 = sbr.rel (0) target = $region45
    $region44: #{_ensemble_call.1} parent=1 // pred_region
      _
    $region45: #{_ensemble_call.1} parent=1 // pred_fallthru
      _
    // Predicated region
    $region46: #{_ensemble_call.1} parent=1 // pred_check
      _
    $region47: #{_ensemble_call.1} parent=1 // pred_check_branch
      %351 = sbr.rel (0) target = $region49
    $region48: #{_ensemble_call.1} parent=1 // pred_region
      _
    $region49: #{_ensemble_call.1} parent=1 // pred_fallthru
      _
    %352 = vsyncpa [#allocation3], 1
    %353 = vsyncpa [#allocation5], 1
    %354 = vsyncpa [#allocation8], 1

</llo_original>
